<compile_context>
chip_gen: v6e
topology: v6e:2x2x1
jax: 0.10.0
libtpu: 0.0.40
codegen_flags: <defaults>
</compile_context>

<pallas_src>
import functools

import jax
import jax.numpy as jnp
from jax import lax
from jax.experimental import pallas as pl
from jax.experimental.pallas import tpu as pltpu


# ---------------------------------------------------------------------------
# Fused forward kernel (QKV projection -> temperature softmax attention ->
# fused out-projection + LeakyReLU), one (batch, query-tile) grid step.
# ---------------------------------------------------------------------------
def _attn_fused_kernel(xq_ref, ctx_ref, wq_ref, wkv_ref, wo_ref, bo_ref,
                       o_ref, q_scr, kv_scr, o_scr, *,
                       heads, dim_head, scale_over_temp):
    inner = heads * dim_head

    # --- K/V projection: once per batch, reused across query tiles --------
    # The query-tile axis is the innermost grid axis and is marked
    # "arbitrary", so t == 0 runs before t > 0 for a given batch on the same
    # core; kv_scr is persistent VMEM scratch and carries across tiles.
    @pl.when(pl.program_id(1) == 0)
    def _():
        ctx = ctx_ref[0].astype(jnp.bfloat16)                      # (M, Dc)
        kv = jnp.dot(ctx, wkv_ref[...],
                     preferred_element_type=jnp.float32)           # (M, 2*inner) f32
        kv_scr[...] = kv.astype(jnp.bfloat16)

    # --- Q projection for this query tile (bf16 MXU, f32 accumulation) ----
    xq = xq_ref[0].astype(jnp.bfloat16)                            # (TQ, Dq)
    q = jnp.dot(xq, wq_ref[...], preferred_element_type=jnp.float32)
    # scale and 1/temperature folded into a single constant applied once to Q.
    q_scr[...] = (q * scale_over_temp).astype(jnp.bfloat16)        # (TQ, inner)

    # --- per-head attention; per-head outputs land in o_scr columns -------
    # Slices are read from VMEM refs (not from live traced values), bounding
    # live ranges to a single head per iteration.
    for h in range(heads):
        s = h * dim_head
        qh = q_scr[:, s:s + dim_head]                              # (TQ, d) bf16
        kh = kv_scr[:, s:s + dim_head]                             # (M,  d) bf16
        vh = kv_scr[:, inner + s:inner + s + dim_head]             # (M,  d) bf16
        # q @ k^T without materializing a transpose: contract the last dims.
        sim = lax.dot_general(qh, kh, (((1,), (1,)), ((), ())),
                              preferred_element_type=jnp.float32)  # (TQ, M) f32
        m = jnp.max(sim, axis=-1, keepdims=True)
        p = jnp.exp(sim - m)
        denom = jnp.sum(p, axis=-1, keepdims=True)
        attn = p * pl.reciprocal(denom, approx=True)               # EUP slot
        oh = jnp.dot(attn.astype(jnp.bfloat16), vh,
                     preferred_element_type=jnp.float32)           # (TQ, d) f32
        o_scr[:, s:s + dim_head] = oh

    # --- ONE fused out-projection over the full inner dim + LeakyReLU -----
    y = jnp.dot(o_scr[...].astype(jnp.bfloat16), wo_ref[...],
                preferred_element_type=jnp.float32)                # (TQ, Dq)
    y = y + bo_ref[...]
    o_ref[0] = jnp.where(y > 0, y, 0.01 * y).astype(o_ref.dtype)   # LeakyReLU(0.01)


# ---------------------------------------------------------------------------
# pallas_call wrapper
# ---------------------------------------------------------------------------
def _pick_q_tile(n, max_tile):
    """Largest query tile <= max_tile that divides n and is a multiple of 8;
    falls back to the full sequence (single tile, no padding needed)."""
    if n <= max_tile:
        return n
    t = (max_tile // 8) * 8
    while t >= 8:
        if n % t == 0:
            return t
        t -= 8
    return n


def _default_vmem_limit_bytes():
    # Generation-aware scoped-VMEM limit: ~75% of physical VMEM (96 MiB on
    # v5e/v6e's 128 MiB, 48 MiB on v7x's 64 MiB), capped at 100 MiB.  The
    # fallback (48 MiB) is safe on all three generations.
    try:
        cap = int(pltpu.get_tpu_info().vmem_capacity_bytes)
        return min(int(cap * 3 // 4), 100 * 1024 * 1024)
    except Exception:
        return 48 * 1024 * 1024


def _fused_attention(x, context, w_q, w_kv, w_out, b_out, *, heads, dim_head,
                     scale_over_temp, max_q_tile=256):
    B, N, Dq = x.shape
    _, M, Dc = context.shape                 # k/v specs from context's OWN shape
    inner = heads * dim_head
    tq = _pick_q_tile(N, max_q_tile)
    n_q_tiles = N // tq

    kernel = functools.partial(_attn_fused_kernel, heads=heads,
                               dim_head=dim_head,
                               scale_over_temp=scale_over_temp)

    return pl.pallas_call(
        kernel,
        out_shape=jax.ShapeDtypeStruct((B, N, Dq), x.dtype),
        grid_spec=pltpu.PrefetchScalarGridSpec(
            num_scalar_prefetch=0,
            grid=(B, n_q_tiles),
            in_specs=[
                pl.BlockSpec((1, tq, Dq), lambda b, t: (b, t, 0)),    # x (query tile)
                pl.BlockSpec((1, M, Dc), lambda b, t: (b, 0, 0)),     # context (full)
                pl.BlockSpec((Dq, inner), lambda b, t: (0, 0)),       # w_q   (bf16)
                pl.BlockSpec((Dc, 2 * inner), lambda b, t: (0, 0)),   # w_kv  (bf16)
                pl.BlockSpec((inner, Dq), lambda b, t: (0, 0)),       # w_out (bf16)
                pl.BlockSpec((1, Dq), lambda b, t: (0, 0)),           # b_out (f32)
            ],
            out_specs=pl.BlockSpec((1, tq, Dq), lambda b, t: (b, t, 0)),
            scratch_shapes=[
                pltpu.VMEM((tq, inner), jnp.bfloat16),      # scaled Q tile
                pltpu.VMEM((M, 2 * inner), jnp.bfloat16),   # K|V, reused across tiles
                pltpu.VMEM((tq, inner), jnp.float32),       # per-head outputs
            ],
        ),
        compiler_params=pltpu.CompilerParams(
            # Batch axis shards across TensorCores; the query-tile axis must
            # stay sequential per core so kv_scr can be reused across tiles.
            dimension_semantics=("parallel", "arbitrary"),
            vmem_limit_bytes=_default_vmem_limit_bytes(),
        ),
    )(x, context, w_q, w_kv, w_out, b_out)


# ---------------------------------------------------------------------------
# Attention module (forward only; dropout p=0.0 -> identity)
# ---------------------------------------------------------------------------
class Attention:
    def __init__(self, query_dim, context_dim=None, heads=8, dim_head=64,
                 dropout=0.0, key=None, max_q_tile=256):
        inner_dim = dim_head * heads
        context_dim = context_dim if context_dim is not None else query_dim
        self.scale = dim_head ** (-0.5)
        self.temperature = 0.5           # matches temperature_softmax(.., 0.5)
        self.heads = heads
        self.dim_head = dim_head
        self.inner_dim = inner_dim
        self.query_dim = query_dim
        self.context_dim = context_dim
        self.max_q_tile = max_q_tile

        if key is None:
            key = jax.random.PRNGKey(0)
        k1, k2, k3 = jax.random.split(key, 3)

        # Deterministic kaiming-normal-style init (fan_in, relu gain).  Weights
        # are stored pre-transposed (Din, Dout) and in bf16: the MXU is bf16-
        # native on v5e/v6e/v7x; all matmuls accumulate in f32.
        def kaiming(k, fan_in, shape):
            return (jax.random.normal(k, shape, jnp.float32)
                    * jnp.sqrt(2.0 / fan_in))

        self.w_q = kaiming(k1, query_dim,
                           (query_dim, inner_dim)).astype(jnp.bfloat16)
        self.w_kv = kaiming(k2, context_dim,
                            (context_dim, inner_dim * 2)).astype(jnp.bfloat16)
        self.w_out = kaiming(k3, inner_dim,
                             (inner_dim, query_dim)).astype(jnp.bfloat16)
        self.b_out = jnp.zeros((1, query_dim), jnp.float32)

        # TODO(synk): attention probabilities (self.attn_weights) are not
        # exported from the fused kernel; the reference module only stores
        # them as a side effect and never reads them in forward.
        self.attn_weights = None

    def __call__(self, x, context=None, mask=None):
        # TODO(synk): mask path (masked_fill_ with -finfo.max) not implemented;
        # reference usage here always passes mask=None.
        context = x if context is None else context
        return _fused_attention(
            x, context, self.w_q, self.w_kv, self.w_out, self.b_out,
            heads=self.heads, dim_head=self.dim_head,
            scale_over_temp=self.scale / self.temperature,
            max_q_tile=self.max_q_tile)


# ---------------------------------------------------------------------------
# Pure-JAX f32 reference (mirrors the PyTorch module) for a correctness check.
# Uses the same (bf16-valued) weights cast back to f32 so the comparison
# isolates the kernel's compute path.
# ---------------------------------------------------------------------------
def _reference_forward(mod, x, context=None):
    h, d = mod.heads, mod.dim_head
    B, N, _ = x.shape
    ctx = x if context is None else context
    M = ctx.shape[1]
    w_q = mod.w_q.astype(jnp.float32)
    w_kv = mod.w_kv.astype(jnp.float32)
    w_out = mod.w_out.astype(jnp.float32)
    q = x @ w_q                                       # (B, N, h*d)
    kv = ctx @ w_kv                                   # (B, M, 2*h*d)
    k, v = kv[..., :mod.inner_dim], kv[..., mod.inner_dim:]

    def split(t, seq):
        return t.reshape(B, seq, h, d).transpose(0, 2, 1, 3)  # (B, h, seq, d)

    qh, kh, vh = split(q, N), split(k, M), split(v, M)
    sim = jnp.einsum('bhid,bhjd->bhij', qh, kh) * mod.scale
    attn = jax.nn.softmax(sim / mod.temperature, axis=-1)
    out = jnp.einsum('bhij,bhjd->bhid', attn, vh)
    out = out.transpose(0, 2, 1, 3).reshape(B, N, h * d)
    y = out @ w_out + mod.b_out[0]
    return jnp.where(y > 0, y, 0.01 * y)


def _check(name, got, want):
    # bf16 MXU operands vs f32 reference -> bf16-appropriate tolerance.
    ok = bool(jnp.allclose(got, want, rtol=5e-2, atol=1e-1))
    assert ok, (name, float(jnp.max(jnp.abs(got - want))))


# ---------------------------------------------------------------------------
if __name__ == "__main__":
    key = jax.random.PRNGKey(0)
    kx, kctx, kx2, kparams = jax.random.split(key, 4)

    B, N, query_dim = 2, 8, 32
    heads, dim_head = 4, 16

    x = jax.random.normal(kx, (B, N, query_dim), jnp.float32)
    attn = Attention(query_dim=query_dim, heads=heads, dim_head=dim_head,
                     key=kparams)

    # 1) Self-attention.
    out = attn(x)
    jax.block_until_ready(out)
    assert out.shape == (B, N, query_dim), out.shape
    _check("self", out, _reference_forward(attn, x))

    # 2) Cross-attention with a different context length (M != N).
    M = 16
    context = jax.random.normal(kctx, (B, M, query_dim), jnp.float32)
    out_x = attn(x, context=context)
    jax.block_until_ready(out_x)
    assert out_x.shape == (B, N, query_dim), out_x.shape
    _check("cross", out_x, _reference_forward(attn, x, context))

    # 3) Query-tiled self-attention (exercises the (B, N//TQ) grid and the
    #    pl.when K/V-reuse path): N=16 with max_q_tile=8 -> 2 query tiles.
    attn_tiled = Attention(query_dim=query_dim, heads=heads,
                           dim_head=dim_head, key=kparams, max_q_tile=8)
    x2 = jax.random.normal(kx2, (B, 16, query_dim), jnp.float32)
    out_t = attn_tiled(x2)
    jax.block_until_ready(out_t)
    assert out_t.shape == (B, 16, query_dim), out_t.shape
    _check("tiled", out_t, _reference_forward(attn_tiled, x2))

    print("KERNEL_OK")
</pallas_src>

<mosaic_0001>
module attributes {stable_mosaic.version = 11 : i64} {
  func.func @_attn_fused_kernel(%arg0: i32, %arg1: i32, %arg2: memref<1x8x32xf32, #tpu.memory_space<vmem>>, %arg3: memref<1x8x32xf32, #tpu.memory_space<vmem>>, %arg4: memref<32x64xbf16, #tpu.memory_space<vmem>>, %arg5: memref<32x128xbf16, #tpu.memory_space<vmem>>, %arg6: memref<64x32xbf16, #tpu.memory_space<vmem>>, %arg7: memref<1x32xf32, #tpu.memory_space<vmem>>, %arg8: memref<1x8x32xf32, #tpu.memory_space<vmem>>, %arg9: memref<8x64xbf16, #tpu.memory_space<vmem>>, %arg10: memref<8x128xbf16, #tpu.memory_space<vmem>>, %arg11: memref<8x64xf32, #tpu.memory_space<vmem>>) attributes {dimension_semantics = [#tpu.dimension_semantics<parallel>, #tpu.dimension_semantics<arbitrary>], iteration_bounds = array<i64: 2, 1>, scalar_prefetch = 0 : i64, scratch_operands = 3 : i64, tpu.core_type = #tpu.core_type<tc>, window_params = [{transform_indices = @transform_0, window_bounds = array<i64: 1, 8, 32>}, {transform_indices = @transform_1, window_bounds = array<i64: 1, 8, 32>}, {pipeline_mode = #tpu.pipeline_mode<synchronous>, transform_indices = @transform_2, window_bounds = array<i64: 32, 64>}, {pipeline_mode = #tpu.pipeline_mode<synchronous>, transform_indices = @transform_3, window_bounds = array<i64: 32, 128>}, {pipeline_mode = #tpu.pipeline_mode<synchronous>, transform_indices = @transform_4, window_bounds = array<i64: 64, 32>}, {pipeline_mode = #tpu.pipeline_mode<synchronous>, transform_indices = @transform_5, window_bounds = array<i64: 1, 32>}, {transform_indices = @transform_6, window_bounds = array<i64: 1, 8, 32>}]} {
    %c0_i32 = arith.constant 0 : i32
    %0 = arith.cmpi eq, %arg1, %c0_i32 : i32
    %1 = arith.extui %0 : i1 to i32
    %c0_i32_0 = arith.constant 0 : i32
    %2 = arith.cmpi ne, %1, %c0_i32_0 : i32
    scf.if %2 {
      %c0_61 = arith.constant 0 : index
      %c0_62 = arith.constant 0 : index
      %c0_63 = arith.constant 0 : index
      %95 = vector.load %arg3[%c0_61, %c0_62, %c0_63] : memref<1x8x32xf32, #tpu.memory_space<vmem>>, vector<1x8x32xf32>
      %96 = vector.shape_cast %95 : vector<1x8x32xf32> to vector<8x32xf32>
      %97 = arith.truncf %96 : vector<8x32xf32> to vector<8x32xbf16>
      %c0_64 = arith.constant 0 : index
      %c0_65 = arith.constant 0 : index
      %98 = vector.load %arg5[%c0_64, %c0_65] : memref<32x128xbf16, #tpu.memory_space<vmem>>, vector<32x128xbf16>
      %cst_66 = arith.constant dense<0.000000e+00> : vector<8x128xf32>
      %99 = tpu.matmul %97, %98, %cst_66 {dimension_numbers = #tpu.dot_dimension_numbers<[1], [0], [0], [1], [0, 0, 1, 1], [], []>} : vector<8x32xbf16>, vector<32x128xbf16>, vector<8x128xf32> -> vector<8x128xf32>
      %100 = arith.truncf %99 : vector<8x128xf32> to vector<8x128xbf16>
      %c0_67 = arith.constant 0 : index
      %c0_68 = arith.constant 0 : index
      %101 = vector.load %arg10[%c0_67, %c0_68] : memref<8x128xbf16, #tpu.memory_space<vmem>>, vector<8x128xbf16>
      tpu.vector_store %arg10[%c0_67, %c0_68], %100 {strides = array<i32>} : memref<8x128xbf16, #tpu.memory_space<vmem>>, vector<8x128xbf16>,
    } else {
    }
    %c0 = arith.constant 0 : index
    %c0_1 = arith.constant 0 : index
    %c0_2 = arith.constant 0 : index
    %3 = vector.load %arg2[%c0, %c0_1, %c0_2] : memref<1x8x32xf32, #tpu.memory_space<vmem>>, vector<1x8x32xf32>
    %4 = vector.shape_cast %3 : vector<1x8x32xf32> to vector<8x32xf32>
    %5 = arith.truncf %4 : vector<8x32xf32> to vector<8x32xbf16>
    %c0_3 = arith.constant 0 : index
    %c0_4 = arith.constant 0 : index
    %6 = vector.load %arg4[%c0_3, %c0_4] : memref<32x64xbf16, #tpu.memory_space<vmem>>, vector<32x64xbf16>
    %cst = arith.constant dense<0.000000e+00> : vector<8x64xf32>
    %7 = tpu.matmul %5, %6, %cst {dimension_numbers = #tpu.dot_dimension_numbers<[1], [0], [0], [1], [0, 0, 1, 1], [], []>} : vector<8x32xbf16>, vector<32x64xbf16>, vector<8x64xf32> -> vector<8x64xf32>
    %cst_5 = arith.constant 5.000000e-01 : f32
    %8 = vector.broadcast %cst_5 : f32 to vector<8x64xf32>
    %9 = arith.mulf %7, %8 : vector<8x64xf32>
    %10 = arith.truncf %9 : vector<8x64xf32> to vector<8x64xbf16>
    %c0_6 = arith.constant 0 : index
    %c0_7 = arith.constant 0 : index
    %11 = vector.load %arg9[%c0_6, %c0_7] : memref<8x64xbf16, #tpu.memory_space<vmem>>, vector<8x64xbf16>
    tpu.vector_store %arg9[%c0_6, %c0_7], %10 {strides = array<i32>} : memref<8x64xbf16, #tpu.memory_space<vmem>>, vector<8x64xbf16>,
    %c0_8 = arith.constant 0 : index
    %c0_9 = arith.constant 0 : index
    %12 = vector.load %arg9[%c0_8, %c0_9] : memref<8x64xbf16, #tpu.memory_space<vmem>>, vector<8x16xbf16>
    %c0_10 = arith.constant 0 : index
    %c0_11 = arith.constant 0 : index
    %13 = vector.load %arg10[%c0_10, %c0_11] : memref<8x128xbf16, #tpu.memory_space<vmem>>, vector<8x16xbf16>
    %c0_12 = arith.constant 0 : index
    %c64 = arith.constant 64 : index
    %14 = vector.load %arg10[%c0_12, %c64] : memref<8x128xbf16, #tpu.memory_space<vmem>>, vector<8x16xbf16>
    %cst_13 = arith.constant dense<0.000000e+00> : vector<8x8xf32>
    %15 = tpu.matmul %12, %13, %cst_13 {dimension_numbers = #tpu.dot_dimension_numbers<[1], [1], [0], [0], [0, 0, 1, 0], [], []>} : vector<8x16xbf16>, vector<8x16xbf16>, vector<8x8xf32> -> vector<8x8xf32>
    %cst_14 = arith.constant dense<0xFF800000> : vector<8xf32>
    %16 = vector.multi_reduction <maximumf>, %15, %cst_14 [1] : vector<8x8xf32> to vector<8xf32>
    %17 = vector.shape_cast %16 : vector<8xf32> to vector<8x1xf32>
    %18 = vector.broadcast %17 : vector<8x1xf32> to vector<8x8xf32>
    %19 = arith.subf %15, %18 : vector<8x8xf32>
    %20 = math.exp %19 : vector<8x8xf32>
    %cst_15 = arith.constant dense<0.000000e+00> : vector<8xf32>
    %21 = vector.multi_reduction <add>, %20, %cst_15 [1] : vector<8x8xf32> to vector<8xf32>
    %22 = vector.shape_cast %21 : vector<8xf32> to vector<8x1xf32>
    %23 = tpu.reciprocal %22 {approx = true} : vector<8x1xf32> -> vector<8x1xf32>
    %24 = vector.broadcast %23 : vector<8x1xf32> to vector<8x8xf32>
    %25 = arith.mulf %20, %24 : vector<8x8xf32>
    %26 = arith.truncf %25 : vector<8x8xf32> to vector<8x8xbf16>
    %cst_16 = arith.constant dense<0.000000e+00> : vector<8x16xf32>
    %27 = tpu.matmul %26, %14, %cst_16 {dimension_numbers = #tpu.dot_dimension_numbers<[1], [0], [0], [1], [0, 0, 1, 1], [], []>} : vector<8x8xbf16>, vector<8x16xbf16>, vector<8x16xf32> -> vector<8x16xf32>
    %c0_17 = arith.constant 0 : index
    %c0_18 = arith.constant 0 : index
    %28 = vector.load %arg11[%c0_17, %c0_18] : memref<8x64xf32, #tpu.memory_space<vmem>>, vector<8x16xf32>
    tpu.vector_store %arg11[%c0_17, %c0_18], %27 {strides = array<i32>} : memref<8x64xf32, #tpu.memory_space<vmem>>, vector<8x16xf32>,
    %c0_19 = arith.constant 0 : index
    %c16 = arith.constant 16 : index
    %29 = vector.load %arg9[%c0_19, %c16] : memref<8x64xbf16, #tpu.memory_space<vmem>>, vector<8x16xbf16>
    %c0_20 = arith.constant 0 : index
    %c16_21 = arith.constant 16 : index
    %30 = vector.load %arg10[%c0_20, %c16_21] : memref<8x128xbf16, #tpu.memory_space<vmem>>, vector<8x16xbf16>
    %c0_22 = arith.constant 0 : index
    %c80 = arith.constant 80 : index
    %31 = vector.load %arg10[%c0_22, %c80] : memref<8x128xbf16, #tpu.memory_space<vmem>>, vector<8x16xbf16>
    %cst_23 = arith.constant dense<0.000000e+00> : vector<8x8xf32>
    %32 = tpu.matmul %29, %30, %cst_23 {dimension_numbers = #tpu.dot_dimension_numbers<[1], [1], [0], [0], [0, 0, 1, 0], [], []>} : vector<8x16xbf16>, vector<8x16xbf16>, vector<8x8xf32> -> vector<8x8xf32>
    %cst_24 = arith.constant dense<0xFF800000> : vector<8xf32>
    %33 = vector.multi_reduction <maximumf>, %32, %cst_24 [1] : vector<8x8xf32> to vector<8xf32>
    %34 = vector.shape_cast %33 : vector<8xf32> to vector<8x1xf32>
    %35 = vector.broadcast %34 : vector<8x1xf32> to vector<8x8xf32>
    %36 = arith.subf %32, %35 : vector<8x8xf32>
    %37 = math.exp %36 : vector<8x8xf32>
    %cst_25 = arith.constant dense<0.000000e+00> : vector<8xf32>
    %38 = vector.multi_reduction <add>, %37, %cst_25 [1] : vector<8x8xf32> to vector<8xf32>
    %39 = vector.shape_cast %38 : vector<8xf32> to vector<8x1xf32>
    %40 = tpu.reciprocal %39 {approx = true} : vector<8x1xf32> -> vector<8x1xf32>
    %41 = vector.broadcast %40 : vector<8x1xf32> to vector<8x8xf32>
    %42 = arith.mulf %37, %41 : vector<8x8xf32>
    %43 = arith.truncf %42 : vector<8x8xf32> to vector<8x8xbf16>
    %cst_26 = arith.constant dense<0.000000e+00> : vector<8x16xf32>
    %44 = tpu.matmul %43, %31, %cst_26 {dimension_numbers = #tpu.dot_dimension_numbers<[1], [0], [0], [1], [0, 0, 1, 1], [], []>} : vector<8x8xbf16>, vector<8x16xbf16>, vector<8x16xf32> -> vector<8x16xf32>
    %c0_27 = arith.constant 0 : index
    %c16_28 = arith.constant 16 : index
    %45 = vector.load %arg11[%c0_27, %c16_28] : memref<8x64xf32, #tpu.memory_space<vmem>>, vector<8x16xf32>
    tpu.vector_store %arg11[%c0_27, %c16_28], %44 {strides = array<i32>} : memref<8x64xf32, #tpu.memory_space<vmem>>, vector<8x16xf32>,
    %c0_29 = arith.constant 0 : index
    %c32 = arith.constant 32 : index
    %46 = vector.load %arg9[%c0_29, %c32] : memref<8x64xbf16, #tpu.memory_space<vmem>>, vector<8x16xbf16>
    %c0_30 = arith.constant 0 : index
    %c32_31 = arith.constant 32 : index
    %47 = vector.load %arg10[%c0_30, %c32_31] : memref<8x128xbf16, #tpu.memory_space<vmem>>, vector<8x16xbf16>
    %c0_32 = arith.constant 0 : index
    %c96 = arith.constant 96 : index
    %48 = vector.load %arg10[%c0_32, %c96] : memref<8x128xbf16, #tpu.memory_space<vmem>>, vector<8x16xbf16>
    %cst_33 = arith.constant dense<0.000000e+00> : vector<8x8xf32>
    %49 = tpu.matmul %46, %47, %cst_33 {dimension_numbers = #tpu.dot_dimension_numbers<[1], [1], [0], [0], [0, 0, 1, 0], [], []>} : vector<8x16xbf16>, vector<8x16xbf16>, vector<8x8xf32> -> vector<8x8xf32>
    %cst_34 = arith.constant dense<0xFF800000> : vector<8xf32>
    %50 = vector.multi_reduction <maximumf>, %49, %cst_34 [1] : vector<8x8xf32> to vector<8xf32>
    %51 = vector.shape_cast %50 : vector<8xf32> to vector<8x1xf32>
    %52 = vector.broadcast %51 : vector<8x1xf32> to vector<8x8xf32>
    %53 = arith.subf %49, %52 : vector<8x8xf32>
    %54 = math.exp %53 : vector<8x8xf32>
    %cst_35 = arith.constant dense<0.000000e+00> : vector<8xf32>
    %55 = vector.multi_reduction <add>, %54, %cst_35 [1] : vector<8x8xf32> to vector<8xf32>
    %56 = vector.shape_cast %55 : vector<8xf32> to vector<8x1xf32>
    %57 = tpu.reciprocal %56 {approx = true} : vector<8x1xf32> -> vector<8x1xf32>
    %58 = vector.broadcast %57 : vector<8x1xf32> to vector<8x8xf32>
    %59 = arith.mulf %54, %58 : vector<8x8xf32>
    %60 = arith.truncf %59 : vector<8x8xf32> to vector<8x8xbf16>
    %cst_36 = arith.constant dense<0.000000e+00> : vector<8x16xf32>
    %61 = tpu.matmul %60, %48, %cst_36 {dimension_numbers = #tpu.dot_dimension_numbers<[1], [0], [0], [1], [0, 0, 1, 1], [], []>} : vector<8x8xbf16>, vector<8x16xbf16>, vector<8x16xf32> -> vector<8x16xf32>
    %c0_37 = arith.constant 0 : index
    %c32_38 = arith.constant 32 : index
    %62 = vector.load %arg11[%c0_37, %c32_38] : memref<8x64xf32, #tpu.memory_space<vmem>>, vector<8x16xf32>
    tpu.vector_store %arg11[%c0_37, %c32_38], %61 {strides = array<i32>} : memref<8x64xf32, #tpu.memory_space<vmem>>, vector<8x16xf32>,
    %c0_39 = arith.constant 0 : index
    %c48 = arith.constant 48 : index
    %63 = vector.load %arg9[%c0_39, %c48] : memref<8x64xbf16, #tpu.memory_space<vmem>>, vector<8x16xbf16>
    %c0_40 = arith.constant 0 : index
    %c48_41 = arith.constant 48 : index
    %64 = vector.load %arg10[%c0_40, %c48_41] : memref<8x128xbf16, #tpu.memory_space<vmem>>, vector<8x16xbf16>
    %c0_42 = arith.constant 0 : index
    %c112 = arith.constant 112 : index
    %65 = vector.load %arg10[%c0_42, %c112] : memref<8x128xbf16, #tpu.memory_space<vmem>>, vector<8x16xbf16>
    %cst_43 = arith.constant dense<0.000000e+00> : vector<8x8xf32>
    %66 = tpu.matmul %63, %64, %cst_43 {dimension_numbers = #tpu.dot_dimension_numbers<[1], [1], [0], [0], [0, 0, 1, 0], [], []>} : vector<8x16xbf16>, vector<8x16xbf16>, vector<8x8xf32> -> vector<8x8xf32>
    %cst_44 = arith.constant dense<0xFF800000> : vector<8xf32>
    %67 = vector.multi_reduction <maximumf>, %66, %cst_44 [1] : vector<8x8xf32> to vector<8xf32>
    %68 = vector.shape_cast %67 : vector<8xf32> to vector<8x1xf32>
    %69 = vector.broadcast %68 : vector<8x1xf32> to vector<8x8xf32>
    %70 = arith.subf %66, %69 : vector<8x8xf32>
    %71 = math.exp %70 : vector<8x8xf32>
    %cst_45 = arith.constant dense<0.000000e+00> : vector<8xf32>
    %72 = vector.multi_reduction <add>, %71, %cst_45 [1] : vector<8x8xf32> to vector<8xf32>
    %73 = vector.shape_cast %72 : vector<8xf32> to vector<8x1xf32>
    %74 = tpu.reciprocal %73 {approx = true} : vector<8x1xf32> -> vector<8x1xf32>
    %75 = vector.broadcast %74 : vector<8x1xf32> to vector<8x8xf32>
    %76 = arith.mulf %71, %75 : vector<8x8xf32>
    %77 = arith.truncf %76 : vector<8x8xf32> to vector<8x8xbf16>
    %cst_46 = arith.constant dense<0.000000e+00> : vector<8x16xf32>
    %78 = tpu.matmul %77, %65, %cst_46 {dimension_numbers = #tpu.dot_dimension_numbers<[1], [0], [0], [1], [0, 0, 1, 1], [], []>} : vector<8x8xbf16>, vector<8x16xbf16>, vector<8x16xf32> -> vector<8x16xf32>
    %c0_47 = arith.constant 0 : index
    %c48_48 = arith.constant 48 : index
    %79 = vector.load %arg11[%c0_47, %c48_48] : memref<8x64xf32, #tpu.memory_space<vmem>>, vector<8x16xf32>
    tpu.vector_store %arg11[%c0_47, %c48_48], %78 {strides = array<i32>} : memref<8x64xf32, #tpu.memory_space<vmem>>, vector<8x16xf32>,
    %c0_49 = arith.constant 0 : index
    %c0_50 = arith.constant 0 : index
    %80 = vector.load %arg11[%c0_49, %c0_50] : memref<8x64xf32, #tpu.memory_space<vmem>>, vector<8x64xf32>
    %81 = arith.truncf %80 : vector<8x64xf32> to vector<8x64xbf16>
    %c0_51 = arith.constant 0 : index
    %c0_52 = arith.constant 0 : index
    %82 = vector.load %arg6[%c0_51, %c0_52] : memref<64x32xbf16, #tpu.memory_space<vmem>>, vector<64x32xbf16>
    %cst_53 = arith.constant dense<0.000000e+00> : vector<8x32xf32>
    %83 = tpu.matmul %81, %82, %cst_53 {dimension_numbers = #tpu.dot_dimension_numbers<[1], [0], [0], [1], [0, 0, 1, 1], [], []>} : vector<8x64xbf16>, vector<64x32xbf16>, vector<8x32xf32> -> vector<8x32xf32>
    %c0_54 = arith.constant 0 : index
    %c0_55 = arith.constant 0 : index
    %84 = vector.load %arg7[%c0_54, %c0_55] : memref<1x32xf32, #tpu.memory_space<vmem>>, vector<1x32xf32>
    %85 = vector.broadcast %84 : vector<1x32xf32> to vector<8x32xf32>
    %86 = arith.addf %83, %85 : vector<8x32xf32>
    %cst_56 = arith.constant 0.000000e+00 : f32
    %87 = vector.broadcast %cst_56 : f32 to vector<8x32xf32>
    %88 = arith.cmpf ogt, %86, %87 : vector<8x32xf32>
    %cst_57 = arith.constant 0.00999999977 : f32
    %89 = vector.broadcast %cst_57 : f32 to vector<8x32xf32>
    %90 = arith.mulf %89, %86 : vector<8x32xf32>
    %91 = arith.select %88, %86, %90 : vector<8x32xi1>, vector<8x32xf32>
    %c0_58 = arith.constant 0 : index
    %c0_59 = arith.constant 0 : index
    %c0_60 = arith.constant 0 : index
    %92 = vector.load %arg8[%c0_58, %c0_59, %c0_60] : memref<1x8x32xf32, #tpu.memory_space<vmem>>, vector<1x8x32xf32>
    %93 = vector.shape_cast %92 : vector<1x8x32xf32> to vector<8x32xf32>
    %94 = vector.shape_cast %91 : vector<8x32xf32> to vector<1x8x32xf32>
    tpu.vector_store %arg8[%c0_58, %c0_59, %c0_60], %94 {strides = array<i32>} : memref<1x8x32xf32, #tpu.memory_space<vmem>>, vector<1x8x32xf32>,
    return
  }
  func.func @transform_0(%arg0: i32, %arg1: i32) -> (i32, i32, i32) {
    %c0_i32 = arith.constant 0 : i32
    %c0_i32_0 = arith.constant 0 : i32
    return %arg0, %arg1, %c0_i32 : i32, i32, i32
  }
  func.func @transform_1(%arg0: i32, %arg1: i32) -> (i32, i32, i32) {
    %c0_i32 = arith.constant 0 : i32
    %c0_i32_0 = arith.constant 0 : i32
    %c0_i32_1 = arith.constant 0 : i32
    return %arg0, %c0_i32, %c0_i32_0 : i32, i32, i32
  }
  func.func @transform_2(%arg0: i32, %arg1: i32) -> (i32, i32) {
    %c0_i32 = arith.constant 0 : i32
    %c0_i32_0 = arith.constant 0 : i32
    %c0_i32_1 = arith.constant 0 : i32
    return %c0_i32, %c0_i32_0 : i32, i32
  }
  func.func @transform_3(%arg0: i32, %arg1: i32) -> (i32, i32) {
    %c0_i32 = arith.constant 0 : i32
    %c0_i32_0 = arith.constant 0 : i32
    %c0_i32_1 = arith.constant 0 : i32
    return %c0_i32, %c0_i32_0 : i32, i32
  }
  func.func @transform_4(%arg0: i32, %arg1: i32) -> (i32, i32) {
    %c0_i32 = arith.constant 0 : i32
    %c0_i32_0 = arith.constant 0 : i32
    %c0_i32_1 = arith.constant 0 : i32
    return %c0_i32, %c0_i32_0 : i32, i32
  }
  func.func @transform_5(%arg0: i32, %arg1: i32) -> (i32, i32) {
    %c0_i32 = arith.constant 0 : i32
    %c0_i32_0 = arith.constant 0 : i32
    %c0_i32_1 = arith.constant 0 : i32
    return %c0_i32, %c0_i32_0 : i32, i32
  }
  func.func @transform_6(%arg0: i32, %arg1: i32) -> (i32, i32, i32) {
    %c0_i32 = arith.constant 0 : i32
    %c0_i32_0 = arith.constant 0 : i32
    return %arg0, %arg1, %c0_i32 : i32, i32, i32
  }
}

</mosaic_0001>

<llo_original>
// kernel: tpu_custom_call.1
$region0: #{tpu_custom_call.1}
  #allocation0 [shape = 'u32[]', space=smem, size = 0x4, offset = 0x4, fixed_abs, tag = 'smem constant byte address 0x4 - core index']
  #allocation1 [shape = 'u32[144,128]{1,0:T(1,128)}', space=vmem, size = 0x12000, scoped, tag = 'internal scratch']
  #allocation2 [shape = 'bf16[8,64]{1,0:T(8,128)(2,1)}', space=vmem, size = 0x800, scoped, tag = 'scratch operand']
  #allocation3 [shape = 'bf16[8,128]{1,0:T(8,128)(2,1)}', space=vmem, size = 0x800, scoped, tag = 'scratch operand']
  #allocation4 [shape = 'f32[8,64]{1,0:T(8,128)}', space=vmem, size = 0x1000, scoped, tag = 'scratch operand']
  %s0 = inlined_call_operand.vmem [shape: f32[2,8,32], index: 0, kind: input, shape index: {}]
  %s1 = inlined_call_operand.vmem [shape: f32[2,8,32], index: 1, kind: input, shape index: {}]
  %s2 = inlined_call_operand.vmem [shape: bf16[32,64], index: 2, kind: input, shape index: {}]
  %s3 = inlined_call_operand.hbm [shape: bf16[32,128], index: 3, kind: input, shape index: {}]
  %s4 = inlined_call_operand.vmem [shape: bf16[64,32], index: 4, kind: input, shape index: {}]
  %s5 = inlined_call_operand.vmem [shape: f32[1,32], index: 5, kind: input, shape index: {}]
  %s6 = inlined_call_operand.hbm [shape: f32[2,8,32], index: 6, kind: output, shape index: {}]
  %s7 = sld [smem:[#allocation0]]
  $region65: #{tpu_custom_call.1} parent=0
    _
  %s9 = ssub.s32 1, %s7
  %s10 = scalar_select 0, %s9, %s7
  $region1: #{tpu_custom_call.1} parent=0
    #allocation5 [shape = 'u8[8192]{0}', space=vmem, size = 0x2000, scoped, tag = 'input window, operand 3, single buffered']
    #allocation6 [shape = 's32[2]{0}', space=sflag, size = 0x8, scoped, tag = 'scoped memory for tpu_custom_call.1']
    #allocation7 [shape = 's32[2]{0}', space=sflag, size = 0x8, scoped, tag = 'scoped memory for tpu_custom_call.1']
    #allocation8 [shape = 'u8[8192]{0}', space=vmem, size = 0x2000, scoped, tag = 'output window, operand 0']
    %11 = vsyncpa [#allocation6], 0
    %12 = vsyncpa [#allocation7], 0
    %s13 = scalar_lea.sflag [#allocation7], 1
    %14 = vsyncpa %s13, 0
    loop: start=0, step=1, limit=4
    $region2: #{tpu_custom_call.1} parent=1 // loop_pre_header
      _
    $region3: #{tpu_custom_call.1} parent=1 // loop_header
      %s16 = sphi 0, %s20
      %p17 = scmp.ge.s32.totalorder %s16, 4
      %s23 = sphi 0, %s35
      %s24 = sphi 0, %s31
      %s25 = sphi 0, %s23
      %s26 = sphi 0, %s24
      %s27 = sphi 0, %s25
      %s28 = sphi 0, %s26
      %s40 = sphi 0, %s42
      %s43 = sphi 0, %s40
      %s44 = sphi 0, %s43
      %s60 = sphi 0, %s44
      %s66 = sphi 0, %s68
      %s69 = sphi 0, %s66
      %s70 = sphi 0, %s69
      %s86 = sphi 0, %s70
      %s90 = sphi 0, %s90
      %s92 = sphi 0, %s90
      %s93 = sphi 0, %s92
      %s107 = sphi 0, %s93
      %s111 = sphi 0, %s111
      %s113 = sphi 0, %s111
      %s114 = sphi 0, %s113
      %s128 = sphi 0, %s114
      %s132 = sphi 0, %s132
      %s134 = sphi 0, %s132
      %s135 = sphi 0, %s134
      %s149 = sphi 0, %s135
      %s153 = sphi 0, %s153
      %s155 = sphi 0, %s153
      %s156 = sphi 0, %s155
      %s170 = sphi 0, %s156
      %s178 = sphi 0, %s180
      %s181 = sphi 0, %s178
      %s182 = sphi 0, %s181
      %s198 = sphi 0, %s182
    $region4: #{tpu_custom_call.1} parent=1 // loop_header_branch
      %19 = sbr.rel (%p17) target = $region8
    $region5: #{tpu_custom_call.1} parent=1 // loop_body
      %s21 = ssub.s32 %s16, 1
      %s22 = ssub.s32 %s16, 2
      %s29 = sadd.s32 1, %s24
      %p30 = scmp.ge.s32.totalorder %s29, 1
      %s31 = scalar_select %p30, 0, %s29
      %s32 = sadd.s32 1, %s23
      %s33 = scalar_select %p30, %s32, %s23
      %p34 = scmp.ge.s32.totalorder %s33, 2
      %s35 = scalar_select %p34, 0, %s33
      %s36 = ssub.s32 %s23, %s35
      %s37 = ssub.s32 %s24, %s31
      %s38 = sor.u32 %s36, %s37
      %p39 = scmp.eq.s32.totalorder %s38, 0
      %s41 = sadd.s32 %s40, 1
      %s42 = scalar_select %p39, %s40, %s41
      %p45 = pneg %p39
      %p46 = scmp.eq.s32.totalorder %s16, 1
      %p47 = por %p45, %p46
      %p48 = scmp.ne.s32.totalorder %s40, %s43
      %p49 = scmp.eq.s32.totalorder %s16, 0
      %p50 = por %p48, %p49
      %p51 = scmp.ne.s32.totalorder %s40, %s43
      %p52 = scmp.eq.s32.totalorder %s21, 1
      %p53 = por %p51, %p52
      %p54 = scmp.ne.s32.totalorder %s43, %s44
      %p55 = scmp.eq.s32.totalorder %s21, 0
      %p56 = por %p54, %p55
      %p57 = scmp.ne.s32.totalorder %s43, %s44
      %p58 = scmp.eq.s32.totalorder %s22, 1
      %p59 = por %p57, %p58
      %p61 = scmp.ne.s32.totalorder %s44, %s60
      %p62 = scmp.eq.s32.totalorder %s22, 0
      %p63 = por %p61, %p62
      %s64 = ssub.s32 %s23, %s35
      %p65 = scmp.eq.s32.totalorder %s64, 0
      %s67 = sadd.s32 %s66, 1
      %s68 = scalar_select %p65, %s66, %s67
      %p71 = pneg %p65
      %p72 = scmp.eq.s32.totalorder %s16, 1
      %p73 = por %p71, %p72
      %p74 = scmp.ne.s32.totalorder %s66, %s69
      %p75 = scmp.eq.s32.totalorder %s16, 0
      %p76 = por %p74, %p75
      %p77 = scmp.ne.s32.totalorder %s66, %s69
      %p78 = scmp.eq.s32.totalorder %s21, 1
      %p79 = por %p77, %p78
      %p80 = scmp.ne.s32.totalorder %s69, %s70
      %p81 = scmp.eq.s32.totalorder %s21, 0
      %p82 = por %p80, %p81
      %p83 = scmp.ne.s32.totalorder %s69, %s70
      %p84 = scmp.eq.s32.totalorder %s22, 1
      %p85 = por %p83, %p84
      %p87 = scmp.ne.s32.totalorder %s70, %s86
      %p88 = scmp.eq.s32.totalorder %s22, 0
      %p89 = por %p87, %p88
      %s91 = sadd.s32 %s90, 1
      %p94 = scmp.eq.s32.totalorder %s16, 1
      %p95 = scmp.ne.s32.totalorder %s90, %s92
      %p96 = scmp.eq.s32.totalorder %s16, 0
      %p97 = por %p95, %p96
      %p98 = scmp.ne.s32.totalorder %s90, %s92
      %p99 = scmp.eq.s32.totalorder %s21, 1
      %p100 = por %p98, %p99
      %p101 = scmp.ne.s32.totalorder %s92, %s93
      %p102 = scmp.eq.s32.totalorder %s21, 0
      %p103 = por %p101, %p102
      %p104 = scmp.ne.s32.totalorder %s92, %s93
      %p105 = scmp.eq.s32.totalorder %s22, 1
      %p106 = por %p104, %p105
      %p108 = scmp.ne.s32.totalorder %s93, %s107
      %p109 = scmp.eq.s32.totalorder %s22, 0
      %p110 = por %p108, %p109
      %s112 = sadd.s32 %s111, 1
      %p115 = scmp.eq.s32.totalorder %s16, 1
      %p116 = scmp.ne.s32.totalorder %s111, %s113
      %p117 = scmp.eq.s32.totalorder %s16, 0
      %p118 = por %p116, %p117
      %p119 = scmp.ne.s32.totalorder %s111, %s113
      %p120 = scmp.eq.s32.totalorder %s21, 1
      %p121 = por %p119, %p120
      %p122 = scmp.ne.s32.totalorder %s113, %s114
      %p123 = scmp.eq.s32.totalorder %s21, 0
      %p124 = por %p122, %p123
      %p125 = scmp.ne.s32.totalorder %s113, %s114
      %p126 = scmp.eq.s32.totalorder %s22, 1
      %p127 = por %p125, %p126
      %p129 = scmp.ne.s32.totalorder %s114, %s128
      %p130 = scmp.eq.s32.totalorder %s22, 0
      %p131 = por %p129, %p130
      %s133 = sadd.s32 %s132, 1
      %p136 = scmp.eq.s32.totalorder %s16, 1
      %p137 = scmp.ne.s32.totalorder %s132, %s134
      %p138 = scmp.eq.s32.totalorder %s16, 0
      %p139 = por %p137, %p138
      %p140 = scmp.ne.s32.totalorder %s132, %s134
      %p141 = scmp.eq.s32.totalorder %s21, 1
      %p142 = por %p140, %p141
      %p143 = scmp.ne.s32.totalorder %s134, %s135
      %p144 = scmp.eq.s32.totalorder %s21, 0
      %p145 = por %p143, %p144
      %p146 = scmp.ne.s32.totalorder %s134, %s135
      %p147 = scmp.eq.s32.totalorder %s22, 1
      %p148 = por %p146, %p147
      %p150 = scmp.ne.s32.totalorder %s135, %s149
      %p151 = scmp.eq.s32.totalorder %s22, 0
      %p152 = por %p150, %p151
      %s154 = sadd.s32 %s153, 1
      %p157 = scmp.eq.s32.totalorder %s16, 1
      %p158 = scmp.ne.s32.totalorder %s153, %s155
      %p159 = scmp.eq.s32.totalorder %s16, 0
      %p160 = por %p158, %p159
      %p161 = scmp.ne.s32.totalorder %s153, %s155
      %p162 = scmp.eq.s32.totalorder %s21, 1
      %p163 = por %p161, %p162
      %p164 = scmp.ne.s32.totalorder %s155, %s156
      %p165 = scmp.eq.s32.totalorder %s21, 0
      %p166 = por %p164, %p165
      %p167 = scmp.ne.s32.totalorder %s155, %s156
      %p168 = scmp.eq.s32.totalorder %s22, 1
      %p169 = por %p167, %p168
      %p171 = scmp.ne.s32.totalorder %s156, %s170
      %p172 = scmp.eq.s32.totalorder %s22, 0
      %p173 = por %p171, %p172
      %s174 = ssub.s32 %s23, %s35
      %s175 = ssub.s32 %s24, %s31
      %s176 = sor.u32 %s174, %s175
      %p177 = scmp.eq.s32.totalorder %s176, 0
      %s179 = sadd.s32 %s178, 1
      %s180 = scalar_select %p177, %s178, %s179
      %p183 = pneg %p177
      %p184 = scmp.eq.s32.totalorder %s16, 1
      %p185 = por %p183, %p184
      %p186 = scmp.ne.s32.totalorder %s178, %s181
      %p187 = scmp.eq.s32.totalorder %s16, 0
      %p188 = por %p186, %p187
      %p189 = scmp.ne.s32.totalorder %s178, %s181
      %p190 = scmp.eq.s32.totalorder %s21, 1
      %p191 = por %p189, %p190
      %p192 = scmp.ne.s32.totalorder %s181, %s182
      %p193 = scmp.eq.s32.totalorder %s21, 0
      %p194 = por %p192, %p193
      %p195 = scmp.ne.s32.totalorder %s181, %s182
      %p196 = scmp.eq.s32.totalorder %s22, 1
      %p197 = por %p195, %p196
      %p199 = scmp.ne.s32.totalorder %s182, %s198
      %p200 = scmp.eq.s32.totalorder %s22, 0
      %p201 = por %p199, %p200
      %p202 = scmp.le.s32.totalorder 1, %s16
      %p203 = scmp.lt.s32.totalorder %s16, 3
      %p204 = pnand %p202, %p203
      %p205 = pneg %p204
      // Predicated region
      $region9: #{tpu_custom_call.1} parent=5 // pred_check
        _
      $region10: #{tpu_custom_call.1} parent=5 // pred_check_branch
        %207 = sbr.rel (%p204) target = $region12
      $region11: #{tpu_custom_call.1} parent=5 // pred_region
        %s208 = ssub.s32 %s16, 1
        // Predicated region
        $region13: #{tpu_custom_call.1} parent=11 // pred_check
          %p209 = pneg %p103
        $region14: #{tpu_custom_call.1} parent=11 // pred_check_branch
          %211 = sbr.rel (%p209) target = $region16
        $region15: #{tpu_custom_call.1} parent=11 // pred_region
          _
        $region16: #{tpu_custom_call.1} parent=11 // pred_fallthru
          _
        // Predicated region
        $region17: #{tpu_custom_call.1} parent=11 // pred_check
          %p212 = pneg %p124
        $region18: #{tpu_custom_call.1} parent=11 // pred_check_branch
          %214 = sbr.rel (%p212) target = $region20
        $region19: #{tpu_custom_call.1} parent=11 // pred_region
          %s216 = ssub.s32 256, 256
          %217 = vsyncadd [#allocation6], %s216
          %s218 = sshll.u32 [#allocation5], 4
          %s219 = int_to_ptr.vmem [resolvable:$true] %s218
          %224 = dma.hbm_to_vmem [thread:$0]  %s3, 256, %s219, [#allocation6], 64, 64, 4
        $region20: #{tpu_custom_call.1} parent=11 // pred_fallthru
          _
        // Predicated region
        $region21: #{tpu_custom_call.1} parent=11 // pred_check
          %p225 = pneg %p145
        $region22: #{tpu_custom_call.1} parent=11 // pred_check_branch
          %227 = sbr.rel (%p225) target = $region24
        $region23: #{tpu_custom_call.1} parent=11 // pred_region
          _
        $region24: #{tpu_custom_call.1} parent=11 // pred_fallthru
          _
        // Predicated region
        $region25: #{tpu_custom_call.1} parent=11 // pred_check
          %p228 = pneg %p166
        $region26: #{tpu_custom_call.1} parent=11 // pred_check_branch
          %230 = sbr.rel (%p228) target = $region28
        $region27: #{tpu_custom_call.1} parent=11 // pred_region
          _
        $region28: #{tpu_custom_call.1} parent=11 // pred_fallthru
          _
      $region12: #{tpu_custom_call.1} parent=5 // pred_fallthru
        _
      %p231 = scmp.lt.s32.totalorder %s16, 2
      // Predicated region
      $region29: #{tpu_custom_call.1} parent=5 // pred_check
        %p232 = pneg %p231
      $region30: #{tpu_custom_call.1} parent=5 // pred_check_branch
        %234 = sbr.rel (%p232) target = $region32
      $region31: #{tpu_custom_call.1} parent=5 // pred_region
        // Predicated region
        $region33: #{tpu_custom_call.1} parent=31 // pred_check
          %p235 = pneg %p50
        $region34: #{tpu_custom_call.1} parent=31 // pred_check_branch
          %237 = sbr.rel (%p235) target = $region36
        $region35: #{tpu_custom_call.1} parent=31 // pred_region
          %p238 = scmp.lt.s32.totalorder %s23, 1
          %s239 = scalar_select %p238, %s23, 1
          %p240 = scmp.lt.s32.totalorder %s24, 0
          %s241 = scalar_select %p240, %s24, 0
          %s242 = sadd.s32 %s241, %s239
          %s243 = smul.addr %s242, 8
          %s244 = scalar_lea.vmem %s0, %s243
        $region36: #{tpu_custom_call.1} parent=31 // pred_fallthru
          _
        // Predicated region
        $region37: #{tpu_custom_call.1} parent=31 // pred_check
          %p245 = pneg %p76
        $region38: #{tpu_custom_call.1} parent=31 // pred_check_branch
          %247 = sbr.rel (%p245) target = $region40
        $region39: #{tpu_custom_call.1} parent=31 // pred_region
          %p248 = scmp.lt.s32.totalorder %s23, 1
          %s249 = scalar_select %p248, %s23, 1
          %s250 = smul.addr %s249, 8
          %s251 = scalar_lea.vmem %s1, %s250
        $region40: #{tpu_custom_call.1} parent=31 // pred_fallthru
          _
      $region32: #{tpu_custom_call.1} parent=5 // pred_fallthru
        _
      %p252 = scmp.le.s32.totalorder 1, %s16
      %p253 = scmp.lt.s32.totalorder %s16, 3
      %p254 = pnand %p252, %p253
      %p255 = pneg %p254
      // Predicated region
      $region41: #{tpu_custom_call.1} parent=5 // pred_check
        _
      $region42: #{tpu_custom_call.1} parent=5 // pred_check_branch
        %257 = sbr.rel (%p254) target = $region44
      $region43: #{tpu_custom_call.1} parent=5 // pred_region
        %s258 = ssub.s32 %s16, 1
        // Predicated region
        $region45: #{tpu_custom_call.1} parent=43 // pred_check
          %p259 = pneg %p124
        $region46: #{tpu_custom_call.1} parent=43 // pred_check_branch
          %261 = sbr.rel (%p259) target = $region48
        $region47: #{tpu_custom_call.1} parent=43 // pred_region
          %262 = dma.done [#allocation6], 256
        $region48: #{tpu_custom_call.1} parent=43 // pred_fallthru
          _
        %p263 = scmp.lt.s32.totalorder %s25, 1
        %s264 = scalar_select %p263, %s25, 1
        %p265 = scmp.lt.s32.totalorder %s26, 0
        %s266 = scalar_select %p265, %s26, 0
        %s267 = sadd.s32 %s266, %s264
        %s268 = smul.addr %s267, 8
        %s269 = scalar_lea.vmem %s0, %s268
        %p270 = pneg %p56
        %p271 = pneg %p53
        %p272 = scmp.lt.s32.totalorder %s25, 1
        %s273 = scalar_select %p272, %s25, 1
        %s274 = smul.addr %s273, 8
        %s275 = scalar_lea.vmem %s1, %s274
        %p276 = pneg %p82
        %p277 = pneg %p79
        %p278 = pneg %p103
        %p279 = pneg %p100
        %p280 = pneg %p124
        %p281 = pneg %p121
        %p282 = pneg %p145
        %p283 = pneg %p142
        %p284 = pneg %p166
        %p285 = pneg %p163
        %p286 = pneg %p194
        %p287 = pneg %p191
        %s288 = sand.u32 %s181, 1
        %s289 = scalar_lea.sflag [#allocation7], %s288
        %s290 = sand.u32 %s181, 1
        %s291 = smul.addr %s290, 8
        %s292 = scalar_lea.vmem [#allocation8], %s291
        %p293 = scmp.lt.s32.totalorder %s25, 1
        %s294 = scalar_select %p293, %s25, 1
        %p295 = scmp.lt.s32.totalorder %s26, 0
        %s296 = scalar_select %p295, %s26, 0
        %s297 = sadd.s32 %s296, %s294
        %s298 = smul.addr %s297, 8
        %s299 = scalar_lea.vmem %s0, %s298
        %p300 = scmp.lt.s32.totalorder %s25, 1
        %s301 = scalar_select %p300, %s25, 1
        %s302 = smul.addr %s301, 8
        %s303 = scalar_lea.vmem %s1, %s302
        %p305 = scmp.eq.s32.totalorder %s26, 0
        // Predicated region
        $region49: #{tpu_custom_call.1} parent=43 // pred_check
          %p306 = pneg %p305
        $region50: #{tpu_custom_call.1} parent=43 // pred_check_branch
          %308 = sbr.rel (%p306) target = $region52
        $region51: #{tpu_custom_call.1} parent=43 // pred_region
          %v309 = vld [vmem:[%s303] sm:$0xff]
          %v310 = vpack.c.bf16 %v309, %v309
          %v311 = vld [vmem:[#allocation5] sm:$0xf]
          %v312 = vld [vmem:[#allocation5 + $0x4] sm:$0xf]
          %v313 = vld [vmem:[#allocation5 + $0x8] sm:$0xf]
          %v314 = vld [vmem:[#allocation5 + $0xc] sm:$0xf]
          %v319 = vunpack.c.l.b16 %v311
          %v320 = vunpack.c.l.b16 %v312
          %v321 = vunpack.c.l.b16 %v313
          %v322 = vunpack.c.l.b16 %v314
          %v323 = vpack.c.b16 %v320, %v319
          %v324 = vpack.c.b16 %v322, %v321
          %vm327 = vcmask 261120
          %v329 = vsel %vm327, %v310, 0
          %331 = vmatprep.subr.bf16.mxu0 0
          %332 = vmatpush1.bf16.msra.mxu0 0
          %333 = vmatprep.subr.bf16.mxu0 0
          %334 = vmatpush1.bf16.msra.mxu0 0
          %335 = vmatprep.subr.bf16.mxu0 0
          %336 = vmatpush1.bf16.msra.mxu0 0
          %337 = vmatprep.subr.bf16.mxu0 0
          %338 = vmatpush1.bf16.msra.mxu0 0
          %339 = vmatprep.subr.bf16.mxu0 0
          %340 = vmatpush1.bf16.msra.mxu0 0
          %341 = vmatprep.subr.bf16.mxu0 0
          %342 = vmatpush1.bf16.msra.mxu0 0
          %343 = vmatprep.subr.bf16.mxu0 0
          %344 = vmatpush1.bf16.msra.mxu0 %v324
          %345 = vmatprep.subr.bf16.mxu0 0
          %346 = vmatpush1.bf16.msra.mxu0 %v323
          %347 = vmatprep.subr.bf16.mxu0 0
          %348 = vmatpush2.bf16.msra.mxu0 0
          %349 = vmatprep.subr.bf16.mxu0 0
          %350 = vmatpush2.bf16.msra.mxu0 0
          %351 = vmatprep.subr.bf16.mxu0 0
          %352 = vmatpush2.bf16.msra.mxu0 0
          %353 = vmatprep.subr.bf16.mxu0 0
          %354 = vmatpush2.bf16.msra.mxu0 0
          %355 = vmatprep.subr.bf16.mxu0 0
          %356 = vmatpush2.bf16.msra.mxu0 0
          %357 = vmatprep.subr.bf16.mxu0 0
          %358 = vmatpush2.bf16.msra.mxu0 0
          %359 = vmatprep.subr.bf16.mxu0 0
          %360 = vmatpush2.bf16.msra.mxu0 0
          %361 = vmatprep.subr.bf16.mxu0 0
          %362 = vmatpush2.bf16.msra.mxu0 0
          %363 = vmatprep.mubr.bf16.mxu0 0
          %364 = vmatmul.mubr.bf16.gmra.mxu0 %v329
          %v365 = vpop.f32.mrf.mxu0
          %v366 = vadd.f32 0.0, %v365
          %v367 = vpop.f32.mrf.mxu0
          %v368 = vpop.f32.mrf.mxu0
          %v369 = vpop.f32.mrf.mxu0
          %370 = vdwg.mxu0
          %v371 = vpack.c.bf16 %v366, %v366
          %372 = vst [vmem:[#allocation3] sm:$0xf] %v371
        $region52: #{tpu_custom_call.1} parent=43 // pred_fallthru
          _
        %v373 = vld [vmem:[%s299] sm:$0xff]
        %v374 = vpack.c.bf16 %v373, %v373
        %v375 = vld [vmem:[%s2] sm:$0xf]
        %v376 = vld [vmem:[%s2 + $0x4] sm:$0xf]
        %v377 = vld [vmem:[%s2 + $0x8] sm:$0xf]
        %v378 = vld [vmem:[%s2 + $0xc] sm:$0xf]
        %v383 = vunpack.c.l.b16 %v375
        %v384 = vunpack.c.l.b16 %v376
        %v385 = vunpack.c.l.b16 %v377
        %v386 = vunpack.c.l.b16 %v378
        %v387 = vpack.c.b16 %v384, %v383
        %v388 = vpack.c.b16 %v386, %v385
        %vm391 = vcmask 261120
        %v393 = vsel %vm391, %v374, 0
        %395 = vmatprep.subr.bf16.mxu0 0
        %396 = vmatpush1.bf16.msra.mxu0 0
        %397 = vmatprep.subr.bf16.mxu0 0
        %398 = vmatpush1.bf16.msra.mxu0 0
        %399 = vmatprep.subr.bf16.mxu0 0
        %400 = vmatpush1.bf16.msra.mxu0 0
        %401 = vmatprep.subr.bf16.mxu0 0
        %402 = vmatpush1.bf16.msra.mxu0 0
        %403 = vmatprep.subr.bf16.mxu0 0
        %404 = vmatpush1.bf16.msra.mxu0 0
        %405 = vmatprep.subr.bf16.mxu0 0
        %406 = vmatpush1.bf16.msra.mxu0 0
        %407 = vmatprep.subr.bf16.mxu0 0
        %408 = vmatpush1.bf16.msra.mxu0 %v388
        %409 = vmatprep.subr.bf16.mxu0 0
        %410 = vmatpush1.bf16.msra.mxu0 %v387
        %411 = vmatprep.subr.bf16.mxu0 0
        %412 = vmatpush2.bf16.msra.mxu0 0
        %413 = vmatprep.subr.bf16.mxu0 0
        %414 = vmatpush2.bf16.msra.mxu0 0
        %415 = vmatprep.subr.bf16.mxu0 0
        %416 = vmatpush2.bf16.msra.mxu0 0
        %417 = vmatprep.subr.bf16.mxu0 0
        %418 = vmatpush2.bf16.msra.mxu0 0
        %419 = vmatprep.subr.bf16.mxu0 0
        %420 = vmatpush2.bf16.msra.mxu0 0
        %421 = vmatprep.subr.bf16.mxu0 0
        %422 = vmatpush2.bf16.msra.mxu0 0
        %423 = vmatprep.subr.bf16.mxu0 0
        %424 = vmatpush2.bf16.msra.mxu0 0
        %425 = vmatprep.subr.bf16.mxu0 0
        %426 = vmatpush2.bf16.msra.mxu0 0
        %427 = vmatprep.mubr.bf16.mxu0 0
        %428 = vmatmul.mubr.bf16.gmra.mxu0 %v393
        %v429 = vpop.f32.mrf.mxu0
        %v430 = vadd.f32 0.0, %v429
        %v431 = vpop.f32.mrf.mxu0
        %v432 = vpop.f32.mrf.mxu0
        %v433 = vpop.f32.mrf.mxu0
        %434 = vdwg.mxu0
        %v435 = vmul.f32 %v430, 0.5
        %v436 = vpack.c.bf16 %v435, %v435
        %vm437 = vcmask 519168
        %438 = vst.msk [vmem:[#allocation2] sm:$0xf] %vm437, %v436
        %v439 = vld [vmem:[#allocation2] sm:$0xf]
        %v440 = vld [vmem:[#allocation3] sm:$0xf]
        %vm441 = vcmask 130048
        %v443 = vsel %vm441, %v439, 0
        %v446 = vsel %vm441, %v440, 0
        %448 = vmatprep.subr.bf16.mxu0 0
        %449 = vmatpush1.bf16.xpose.msra.mxu0 0
        %450 = vmatprep.subr.bf16.mxu0 0
        %451 = vmatpush1.bf16.xpose.msra.mxu0 0
        %452 = vmatprep.subr.bf16.mxu0 0
        %453 = vmatpush1.bf16.xpose.msra.mxu0 0
        %454 = vmatprep.subr.bf16.mxu0 0
        %455 = vmatpush1.bf16.xpose.msra.mxu0 0
        %456 = vmatprep.subr.bf16.mxu0 0
        %457 = vmatpush1.bf16.xpose.msra.mxu0 0
        %458 = vmatprep.subr.bf16.mxu0 0
        %459 = vmatpush1.bf16.xpose.msra.mxu0 0
        %460 = vmatprep.subr.bf16.mxu0 0
        %461 = vmatpush1.bf16.xpose.msra.mxu0 0
        %462 = vmatprep.subr.bf16.mxu0 0
        %463 = vmatpush1.bf16.xpose.msra.mxu0 %v446
        %464 = vmatprep.subr.bf16.mxu0 0
        %465 = vmatpush2.bf16.xpose.msra.mxu0 0
        %466 = vmatprep.subr.bf16.mxu0 0
        %467 = vmatpush2.bf16.xpose.msra.mxu0 0
        %468 = vmatprep.subr.bf16.mxu0 0
        %469 = vmatpush2.bf16.xpose.msra.mxu0 0
        %470 = vmatprep.subr.bf16.mxu0 0
        %471 = vmatpush2.bf16.xpose.msra.mxu0 0
        %472 = vmatprep.subr.bf16.mxu0 0
        %473 = vmatpush2.bf16.xpose.msra.mxu0 0
        %474 = vmatprep.subr.bf16.mxu0 0
        %475 = vmatpush2.bf16.xpose.msra.mxu0 0
        %476 = vmatprep.subr.bf16.mxu0 0
        %477 = vmatpush2.bf16.xpose.msra.mxu0 0
        %478 = vmatprep.subr.bf16.mxu0 0
        %479 = vmatpush2.bf16.xpose.msra.mxu0 0
        %480 = vmatprep.mubr.bf16.mxu0 0
        %481 = vmatmul.mubr.bf16.gmra.mxu0 %v443
        %v482 = vpop.f32.mrf.mxu0
        %v483 = vadd.f32 0.0, %v482
        %v484 = vpop.f32.mrf.mxu0
        %v485 = vpop.f32.mrf.mxu0
        %v486 = vpop.f32.mrf.mxu0
        %487 = vdwg.mxu0
        %vm488 = vcmask 64512
        %v489 = vsel %vm488, %v483, -inf
        %490 = vmax.xlane.f32.xlu0 %v489
        %v491 = vpop.xlane.xlu0 %490
        %v492 = vsub.f32 %v483, %v491
        %v493 = vmul.f32 %v492, 1.442695
        %v494 = vpow.pop %v493
        %v495 = vsel %vm488, %v494, 0.0
        %496 = vadd.xlane.f32.xlu0 %v495
        %v497 = vpop.xlane.xlu0 %496
        %v498 = vrcp.pop %v497
        %v499 = vmul.f32 %v494, %v498
        %v500 = vpack.c.bf16 %v499, %v499
        %v502 = vunpack.c.l.b16 %v440
        %v503 = vpack.c.b16 %v502, %v502
        %504 = vrot.lane.b32.xlu0 %v503, 64
        %v505 = vpop.permute.xlu0 %504
        %v507 = vsel %vm488, %v500, 0
        %vm509 = vcmask 1043456
        %v511 = vsel %vm509, %v505, 0
        %513 = vmatprep.subr.bf16.mxu0 0
        %514 = vmatpush1.bf16.msra.mxu0 0
        %515 = vmatprep.subr.bf16.mxu0 0
        %516 = vmatpush1.bf16.msra.mxu0 0
        %517 = vmatprep.subr.bf16.mxu0 0
        %518 = vmatpush1.bf16.msra.mxu0 0
        %519 = vmatprep.subr.bf16.mxu0 0
        %520 = vmatpush1.bf16.msra.mxu0 0
        %521 = vmatprep.subr.bf16.mxu0 0
        %522 = vmatpush1.bf16.msra.mxu0 0
        %523 = vmatprep.subr.bf16.mxu0 0
        %524 = vmatpush1.bf16.msra.mxu0 0
        %525 = vmatprep.subr.bf16.mxu0 0
        %526 = vmatpush1.bf16.msra.mxu0 0
        %527 = vmatprep.subr.bf16.mxu0 0
        %528 = vmatpush1.bf16.msra.mxu0 %v511
        %529 = vmatprep.subr.bf16.mxu0 0
        %530 = vmatpush2.bf16.msra.mxu0 0
        %531 = vmatprep.subr.bf16.mxu0 0
        %532 = vmatpush2.bf16.msra.mxu0 0
        %533 = vmatprep.subr.bf16.mxu0 0
        %534 = vmatpush2.bf16.msra.mxu0 0
        %535 = vmatprep.subr.bf16.mxu0 0
        %536 = vmatpush2.bf16.msra.mxu0 0
        %537 = vmatprep.subr.bf16.mxu0 0
        %538 = vmatpush2.bf16.msra.mxu0 0
        %539 = vmatprep.subr.bf16.mxu0 0
        %540 = vmatpush2.bf16.msra.mxu0 0
        %541 = vmatprep.subr.bf16.mxu0 0
        %542 = vmatpush2.bf16.msra.mxu0 0
        %543 = vmatprep.subr.bf16.mxu0 0
        %544 = vmatpush2.bf16.msra.mxu0 0
        %545 = vmatprep.mubr.bf16.mxu0 0
        %546 = vmatmul.mubr.bf16.gmra.mxu0 %v507
        %v547 = vpop.f32.mrf.mxu0
        %v548 = vadd.f32 0.0, %v547
        %v549 = vpop.f32.mrf.mxu0
        %v550 = vpop.f32.mrf.mxu0
        %v551 = vpop.f32.mrf.mxu0
        %552 = vdwg.mxu0
        %553 = vst.msk [vmem:[#allocation4] sm:$0xff] %vm441, %v548
        %v554 = vld [vmem:[#allocation2] sm:$0xf]
        %v555 = vld [vmem:[#allocation3] sm:$0xf]
        %v557 = vunpack.c.l.b16 %v554
        %v558 = vpack.c.b16 %v557, %v557
        %559 = vrot.lane.b32.xlu0 %v558, 112
        %v560 = vpop.permute.xlu0 %559
        %v562 = vunpack.c.l.b16 %v555
        %v563 = vpack.c.b16 %v562, %v562
        %564 = vrot.lane.b32.xlu0 %v563, 112
        %v565 = vpop.permute.xlu0 %564
        %v567 = vsel %vm441, %v560, 0
        %v570 = vsel %vm441, %v565, 0
        %572 = vmatprep.subr.bf16.mxu0 0
        %573 = vmatpush1.bf16.xpose.msra.mxu0 0
        %574 = vmatprep.subr.bf16.mxu0 0
        %575 = vmatpush1.bf16.xpose.msra.mxu0 0
        %576 = vmatprep.subr.bf16.mxu0 0
        %577 = vmatpush1.bf16.xpose.msra.mxu0 0
        %578 = vmatprep.subr.bf16.mxu0 0
        %579 = vmatpush1.bf16.xpose.msra.mxu0 0
        %580 = vmatprep.subr.bf16.mxu0 0
        %581 = vmatpush1.bf16.xpose.msra.mxu0 0
        %582 = vmatprep.subr.bf16.mxu0 0
        %583 = vmatpush1.bf16.xpose.msra.mxu0 0
        %584 = vmatprep.subr.bf16.mxu0 0
        %585 = vmatpush1.bf16.xpose.msra.mxu0 0
        %586 = vmatprep.subr.bf16.mxu0 0
        %587 = vmatpush1.bf16.xpose.msra.mxu0 %v570
        %588 = vmatprep.subr.bf16.mxu0 0
        %589 = vmatpush2.bf16.xpose.msra.mxu0 0
        %590 = vmatprep.subr.bf16.mxu0 0
        %591 = vmatpush2.bf16.xpose.msra.mxu0 0
        %592 = vmatprep.subr.bf16.mxu0 0
        %593 = vmatpush2.bf16.xpose.msra.mxu0 0
        %594 = vmatprep.subr.bf16.mxu0 0
        %595 = vmatpush2.bf16.xpose.msra.mxu0 0
        %596 = vmatprep.subr.bf16.mxu0 0
        %597 = vmatpush2.bf16.xpose.msra.mxu0 0
        %598 = vmatprep.subr.bf16.mxu0 0
        %599 = vmatpush2.bf16.xpose.msra.mxu0 0
        %600 = vmatprep.subr.bf16.mxu0 0
        %601 = vmatpush2.bf16.xpose.msra.mxu0 0
        %602 = vmatprep.subr.bf16.mxu0 0
        %603 = vmatpush2.bf16.xpose.msra.mxu0 0
        %604 = vmatprep.mubr.bf16.mxu0 0
        %605 = vmatmul.mubr.bf16.gmra.mxu0 %v567
        %v606 = vpop.f32.mrf.mxu0
        %v607 = vadd.f32 0.0, %v606
        %v608 = vpop.f32.mrf.mxu0
        %v609 = vpop.f32.mrf.mxu0
        %v610 = vpop.f32.mrf.mxu0
        %611 = vdwg.mxu0
        %v612 = vsel %vm488, %v607, -inf
        %613 = vmax.xlane.f32.xlu0 %v612
        %v614 = vpop.xlane.xlu0 %613
        %v615 = vsub.f32 %v607, %v614
        %v616 = vmul.f32 %v615, 1.442695
        %v617 = vpow.pop %v616
        %v618 = vsel %vm488, %v617, 0.0
        %619 = vadd.xlane.f32.xlu0 %v618
        %v620 = vpop.xlane.xlu0 %619
        %v621 = vrcp.pop %v620
        %v622 = vmul.f32 %v617, %v621
        %v623 = vpack.c.bf16 %v622, %v622
        %624 = vrot.lane.b32.xlu0 %v563, 48
        %v625 = vpop.permute.xlu0 %624
        %v627 = vsel %vm488, %v623, 0
        %v630 = vsel %vm509, %v625, 0
        %632 = vmatprep.subr.bf16.mxu0 0
        %633 = vmatpush1.bf16.msra.mxu0 0
        %634 = vmatprep.subr.bf16.mxu0 0
        %635 = vmatpush1.bf16.msra.mxu0 0
        %636 = vmatprep.subr.bf16.mxu0 0
        %637 = vmatpush1.bf16.msra.mxu0 0
        %638 = vmatprep.subr.bf16.mxu0 0
        %639 = vmatpush1.bf16.msra.mxu0 0
        %640 = vmatprep.subr.bf16.mxu0 0
        %641 = vmatpush1.bf16.msra.mxu0 0
        %642 = vmatprep.subr.bf16.mxu0 0
        %643 = vmatpush1.bf16.msra.mxu0 0
        %644 = vmatprep.subr.bf16.mxu0 0
        %645 = vmatpush1.bf16.msra.mxu0 0
        %646 = vmatprep.subr.bf16.mxu0 0
        %647 = vmatpush1.bf16.msra.mxu0 %v630
        %648 = vmatprep.subr.bf16.mxu0 0
        %649 = vmatpush2.bf16.msra.mxu0 0
        %650 = vmatprep.subr.bf16.mxu0 0
        %651 = vmatpush2.bf16.msra.mxu0 0
        %652 = vmatprep.subr.bf16.mxu0 0
        %653 = vmatpush2.bf16.msra.mxu0 0
        %654 = vmatprep.subr.bf16.mxu0 0
        %655 = vmatpush2.bf16.msra.mxu0 0
        %656 = vmatprep.subr.bf16.mxu0 0
        %657 = vmatpush2.bf16.msra.mxu0 0
        %658 = vmatprep.subr.bf16.mxu0 0
        %659 = vmatpush2.bf16.msra.mxu0 0
        %660 = vmatprep.subr.bf16.mxu0 0
        %661 = vmatpush2.bf16.msra.mxu0 0
        %662 = vmatprep.subr.bf16.mxu0 0
        %663 = vmatpush2.bf16.msra.mxu0 0
        %664 = vmatprep.mubr.bf16.mxu0 0
        %665 = vmatmul.mubr.bf16.gmra.mxu0 %v627
        %v666 = vpop.f32.mrf.mxu0
        %v667 = vadd.f32 0.0, %v666
        %v668 = vpop.f32.mrf.mxu0
        %v669 = vpop.f32.mrf.mxu0
        %v670 = vpop.f32.mrf.mxu0
        %671 = vdwg.mxu0
        %673 = vrot.lane.b32.xlu0 %v667, 16
        %v674 = vpop.permute.xlu0 %673
        %vm676 = vcmask 261248
        %677 = vst.msk [vmem:[#allocation4] sm:$0xff] %vm676, %v674
        %v678 = vld [vmem:[#allocation2] sm:$0xf]
        %v679 = vld [vmem:[#allocation3] sm:$0xf]
        %v681 = vunpack.c.l.b16 %v678
        %v682 = vpack.c.b16 %v681, %v681
        %683 = vrot.lane.b32.xlu0 %v682, 96
        %v684 = vpop.permute.xlu0 %683
        %v686 = vunpack.c.l.b16 %v679
        %v687 = vpack.c.b16 %v686, %v686
        %688 = vrot.lane.b32.xlu0 %v687, 96
        %v689 = vpop.permute.xlu0 %688
        %v691 = vsel %vm441, %v684, 0
        %v694 = vsel %vm441, %v689, 0
        %696 = vmatprep.subr.bf16.mxu0 0
        %697 = vmatpush1.bf16.xpose.msra.mxu0 0
        %698 = vmatprep.subr.bf16.mxu0 0
        %699 = vmatpush1.bf16.xpose.msra.mxu0 0
        %700 = vmatprep.subr.bf16.mxu0 0
        %701 = vmatpush1.bf16.xpose.msra.mxu0 0
        %702 = vmatprep.subr.bf16.mxu0 0
        %703 = vmatpush1.bf16.xpose.msra.mxu0 0
        %704 = vmatprep.subr.bf16.mxu0 0
        %705 = vmatpush1.bf16.xpose.msra.mxu0 0
        %706 = vmatprep.subr.bf16.mxu0 0
        %707 = vmatpush1.bf16.xpose.msra.mxu0 0
        %708 = vmatprep.subr.bf16.mxu0 0
        %709 = vmatpush1.bf16.xpose.msra.mxu0 0
        %710 = vmatprep.subr.bf16.mxu0 0
        %711 = vmatpush1.bf16.xpose.msra.mxu0 %v694
        %712 = vmatprep.subr.bf16.mxu0 0
        %713 = vmatpush2.bf16.xpose.msra.mxu0 0
        %714 = vmatprep.subr.bf16.mxu0 0
        %715 = vmatpush2.bf16.xpose.msra.mxu0 0
        %716 = vmatprep.subr.bf16.mxu0 0
        %717 = vmatpush2.bf16.xpose.msra.mxu0 0
        %718 = vmatprep.subr.bf16.mxu0 0
        %719 = vmatpush2.bf16.xpose.msra.mxu0 0
        %720 = vmatprep.subr.bf16.mxu0 0
        %721 = vmatpush2.bf16.xpose.msra.mxu0 0
        %722 = vmatprep.subr.bf16.mxu0 0
        %723 = vmatpush2.bf16.xpose.msra.mxu0 0
        %724 = vmatprep.subr.bf16.mxu0 0
        %725 = vmatpush2.bf16.xpose.msra.mxu0 0
        %726 = vmatprep.subr.bf16.mxu0 0
        %727 = vmatpush2.bf16.xpose.msra.mxu0 0
        %728 = vmatprep.mubr.bf16.mxu0 0
        %729 = vmatmul.mubr.bf16.gmra.mxu0 %v691
        %v730 = vpop.f32.mrf.mxu0
        %v731 = vadd.f32 0.0, %v730
        %v732 = vpop.f32.mrf.mxu0
        %v733 = vpop.f32.mrf.mxu0
        %v734 = vpop.f32.mrf.mxu0
        %735 = vdwg.mxu0
        %v736 = vsel %vm488, %v731, -inf
        %737 = vmax.xlane.f32.xlu0 %v736
        %v738 = vpop.xlane.xlu0 %737
        %v739 = vsub.f32 %v731, %v738
        %v740 = vmul.f32 %v739, 1.442695
        %v741 = vpow.pop %v740
        %v742 = vsel %vm488, %v741, 0.0
        %743 = vadd.xlane.f32.xlu0 %v742
        %v744 = vpop.xlane.xlu0 %743
        %v745 = vrcp.pop %v744
        %v746 = vmul.f32 %v741, %v745
        %v747 = vpack.c.bf16 %v746, %v746
        %748 = vrot.lane.b32.xlu0 %v687, 32
        %v749 = vpop.permute.xlu0 %748
        %v751 = vsel %vm488, %v747, 0
        %v754 = vsel %vm509, %v749, 0
        %756 = vmatprep.subr.bf16.mxu0 0
        %757 = vmatpush1.bf16.msra.mxu0 0
        %758 = vmatprep.subr.bf16.mxu0 0
        %759 = vmatpush1.bf16.msra.mxu0 0
        %760 = vmatprep.subr.bf16.mxu0 0
        %761 = vmatpush1.bf16.msra.mxu0 0
        %762 = vmatprep.subr.bf16.mxu0 0
        %763 = vmatpush1.bf16.msra.mxu0 0
        %764 = vmatprep.subr.bf16.mxu0 0
        %765 = vmatpush1.bf16.msra.mxu0 0
        %766 = vmatprep.subr.bf16.mxu0 0
        %767 = vmatpush1.bf16.msra.mxu0 0
        %768 = vmatprep.subr.bf16.mxu0 0
        %769 = vmatpush1.bf16.msra.mxu0 0
        %770 = vmatprep.subr.bf16.mxu0 0
        %771 = vmatpush1.bf16.msra.mxu0 %v754
        %772 = vmatprep.subr.bf16.mxu0 0
        %773 = vmatpush2.bf16.msra.mxu0 0
        %774 = vmatprep.subr.bf16.mxu0 0
        %775 = vmatpush2.bf16.msra.mxu0 0
        %776 = vmatprep.subr.bf16.mxu0 0
        %777 = vmatpush2.bf16.msra.mxu0 0
        %778 = vmatprep.subr.bf16.mxu0 0
        %779 = vmatpush2.bf16.msra.mxu0 0
        %780 = vmatprep.subr.bf16.mxu0 0
        %781 = vmatpush2.bf16.msra.mxu0 0
        %782 = vmatprep.subr.bf16.mxu0 0
        %783 = vmatpush2.bf16.msra.mxu0 0
        %784 = vmatprep.subr.bf16.mxu0 0
        %785 = vmatpush2.bf16.msra.mxu0 0
        %786 = vmatprep.subr.bf16.mxu0 0
        %787 = vmatpush2.bf16.msra.mxu0 0
        %788 = vmatprep.mubr.bf16.mxu0 0
        %789 = vmatmul.mubr.bf16.gmra.mxu0 %v751
        %v790 = vpop.f32.mrf.mxu0
        %v791 = vadd.f32 0.0, %v790
        %v792 = vpop.f32.mrf.mxu0
        %v793 = vpop.f32.mrf.mxu0
        %v794 = vpop.f32.mrf.mxu0
        %795 = vdwg.mxu0
        %797 = vrot.lane.b32.xlu0 %v791, 32
        %v798 = vpop.permute.xlu0 %797
        %vm800 = vcmask 392448
        %801 = vst.msk [vmem:[#allocation4] sm:$0xff] %vm800, %v798
        %v802 = vld [vmem:[#allocation2] sm:$0xf]
        %v803 = vld [vmem:[#allocation3] sm:$0xf]
        %v805 = vunpack.c.l.b16 %v802
        %v806 = vpack.c.b16 %v805, %v805
        %807 = vrot.lane.b32.xlu0 %v806, 80
        %v808 = vpop.permute.xlu0 %807
        %v810 = vunpack.c.l.b16 %v803
        %v811 = vpack.c.b16 %v810, %v810
        %812 = vrot.lane.b32.xlu0 %v811, 80
        %v813 = vpop.permute.xlu0 %812
        %v815 = vsel %vm441, %v808, 0
        %v818 = vsel %vm441, %v813, 0
        %820 = vmatprep.subr.bf16.mxu0 0
        %821 = vmatpush1.bf16.xpose.msra.mxu0 0
        %822 = vmatprep.subr.bf16.mxu0 0
        %823 = vmatpush1.bf16.xpose.msra.mxu0 0
        %824 = vmatprep.subr.bf16.mxu0 0
        %825 = vmatpush1.bf16.xpose.msra.mxu0 0
        %826 = vmatprep.subr.bf16.mxu0 0
        %827 = vmatpush1.bf16.xpose.msra.mxu0 0
        %828 = vmatprep.subr.bf16.mxu0 0
        %829 = vmatpush1.bf16.xpose.msra.mxu0 0
        %830 = vmatprep.subr.bf16.mxu0 0
        %831 = vmatpush1.bf16.xpose.msra.mxu0 0
        %832 = vmatprep.subr.bf16.mxu0 0
        %833 = vmatpush1.bf16.xpose.msra.mxu0 0
        %834 = vmatprep.subr.bf16.mxu0 0
        %835 = vmatpush1.bf16.xpose.msra.mxu0 %v818
        %836 = vmatprep.subr.bf16.mxu0 0
        %837 = vmatpush2.bf16.xpose.msra.mxu0 0
        %838 = vmatprep.subr.bf16.mxu0 0
        %839 = vmatpush2.bf16.xpose.msra.mxu0 0
        %840 = vmatprep.subr.bf16.mxu0 0
        %841 = vmatpush2.bf16.xpose.msra.mxu0 0
        %842 = vmatprep.subr.bf16.mxu0 0
        %843 = vmatpush2.bf16.xpose.msra.mxu0 0
        %844 = vmatprep.subr.bf16.mxu0 0
        %845 = vmatpush2.bf16.xpose.msra.mxu0 0
        %846 = vmatprep.subr.bf16.mxu0 0
        %847 = vmatpush2.bf16.xpose.msra.mxu0 0
        %848 = vmatprep.subr.bf16.mxu0 0
        %849 = vmatpush2.bf16.xpose.msra.mxu0 0
        %850 = vmatprep.subr.bf16.mxu0 0
        %851 = vmatpush2.bf16.xpose.msra.mxu0 0
        %852 = vmatprep.mubr.bf16.mxu0 0
        %853 = vmatmul.mubr.bf16.gmra.mxu0 %v815
        %v854 = vpop.f32.mrf.mxu0
        %v855 = vadd.f32 0.0, %v854
        %v856 = vpop.f32.mrf.mxu0
        %v857 = vpop.f32.mrf.mxu0
        %v858 = vpop.f32.mrf.mxu0
        %859 = vdwg.mxu0
        %v860 = vsel %vm488, %v855, -inf
        %861 = vmax.xlane.f32.xlu0 %v860
        %v862 = vpop.xlane.xlu0 %861
        %v863 = vsub.f32 %v855, %v862
        %v864 = vmul.f32 %v863, 1.442695
        %v865 = vpow.pop %v864
        %v866 = vsel %vm488, %v865, 0.0
        %867 = vadd.xlane.f32.xlu0 %v866
        %v868 = vpop.xlane.xlu0 %867
        %v869 = vrcp.pop %v868
        %v870 = vmul.f32 %v865, %v869
        %v871 = vpack.c.bf16 %v870, %v870
        %872 = vrot.lane.b32.xlu0 %v811, 16
        %v873 = vpop.permute.xlu0 %872
        %v875 = vsel %vm488, %v871, 0
        %v878 = vsel %vm509, %v873, 0
        %880 = vmatprep.subr.bf16.mxu0 0
        %881 = vmatpush1.bf16.msra.mxu0 0
        %882 = vmatprep.subr.bf16.mxu0 0
        %883 = vmatpush1.bf16.msra.mxu0 0
        %884 = vmatprep.subr.bf16.mxu0 0
        %885 = vmatpush1.bf16.msra.mxu0 0
        %886 = vmatprep.subr.bf16.mxu0 0
        %887 = vmatpush1.bf16.msra.mxu0 0
        %888 = vmatprep.subr.bf16.mxu0 0
        %889 = vmatpush1.bf16.msra.mxu0 0
        %890 = vmatprep.subr.bf16.mxu0 0
        %891 = vmatpush1.bf16.msra.mxu0 0
        %892 = vmatprep.subr.bf16.mxu0 0
        %893 = vmatpush1.bf16.msra.mxu0 0
        %894 = vmatprep.subr.bf16.mxu0 0
        %895 = vmatpush1.bf16.msra.mxu0 %v878
        %896 = vmatprep.subr.bf16.mxu0 0
        %897 = vmatpush2.bf16.msra.mxu0 0
        %898 = vmatprep.subr.bf16.mxu0 0
        %899 = vmatpush2.bf16.msra.mxu0 0
        %900 = vmatprep.subr.bf16.mxu0 0
        %901 = vmatpush2.bf16.msra.mxu0 0
        %902 = vmatprep.subr.bf16.mxu0 0
        %903 = vmatpush2.bf16.msra.mxu0 0
        %904 = vmatprep.subr.bf16.mxu0 0
        %905 = vmatpush2.bf16.msra.mxu0 0
        %906 = vmatprep.subr.bf16.mxu0 0
        %907 = vmatpush2.bf16.msra.mxu0 0
        %908 = vmatprep.subr.bf16.mxu0 0
        %909 = vmatpush2.bf16.msra.mxu0 0
        %910 = vmatprep.subr.bf16.mxu0 0
        %911 = vmatpush2.bf16.msra.mxu0 0
        %912 = vmatprep.mubr.bf16.mxu0 0
        %913 = vmatmul.mubr.bf16.gmra.mxu0 %v875
        %v914 = vpop.f32.mrf.mxu0
        %v915 = vadd.f32 0.0, %v914
        %v916 = vpop.f32.mrf.mxu0
        %v917 = vpop.f32.mrf.mxu0
        %v918 = vpop.f32.mrf.mxu0
        %919 = vdwg.mxu0
        %921 = vrot.lane.b32.xlu0 %v915, 48
        %v922 = vpop.permute.xlu0 %921
        %vm924 = vcmask 523648
        %925 = vst.msk [vmem:[#allocation4] sm:$0xff] %vm924, %v922
        %v926 = vld [vmem:[#allocation4] sm:$0xff]
        %v927 = vpack.c.bf16 %v926, %v926
        %v928 = vld [vmem:[%s4] sm:$0xf]
        %v929 = vld [vmem:[%s4 + $0x4] sm:$0xf]
        %v930 = vld [vmem:[%s4 + $0x8] sm:$0xf]
        %v931 = vld [vmem:[%s4 + $0xc] sm:$0xf]
        %v932 = vld [vmem:[%s4 + $0x10] sm:$0xf]
        %v933 = vld [vmem:[%s4 + $0x14] sm:$0xf]
        %v934 = vld [vmem:[%s4 + $0x18] sm:$0xf]
        %v935 = vld [vmem:[%s4 + $0x1c] sm:$0xf]
        %v936 = vld [vmem:[%s5] sm:$0x1]
        %v938 = vlaneseq
        %v939 = vshrl.u32 %v938, 7
        %v940 = vsub.s32 0, %v939
        %v941 = vrot.slane %v936, %v940
        %v951 = vunpack.c.l.b16 %v928
        %v952 = vunpack.c.l.b16 %v929
        %v953 = vunpack.c.l.b16 %v930
        %v954 = vunpack.c.l.b16 %v931
        %v955 = vunpack.c.l.b16 %v932
        %v956 = vunpack.c.l.b16 %v933
        %v957 = vunpack.c.l.b16 %v934
        %v958 = vunpack.c.l.b16 %v935
        %v959 = vpack.c.b16 %v952, %v951
        %v960 = vpack.c.b16 %v954, %v953
        %v961 = vpack.c.b16 %v956, %v955
        %v962 = vpack.c.b16 %v958, %v957
        %vm967 = vcmask 523264
        %v969 = vsel %vm967, %v927, 0
        %971 = vmatprep.subr.bf16.mxu0 0
        %972 = vmatpush1.bf16.msra.mxu0 0
        %973 = vmatprep.subr.bf16.mxu0 0
        %974 = vmatpush1.bf16.msra.mxu0 0
        %975 = vmatprep.subr.bf16.mxu0 0
        %976 = vmatpush1.bf16.msra.mxu0 0
        %977 = vmatprep.subr.bf16.mxu0 0
        %978 = vmatpush1.bf16.msra.mxu0 0
        %979 = vmatprep.subr.bf16.mxu0 0
        %980 = vmatpush1.bf16.msra.mxu0 %v962
        %981 = vmatprep.subr.bf16.mxu0 0
        %982 = vmatpush1.bf16.msra.mxu0 %v961
        %983 = vmatprep.subr.bf16.mxu0 0
        %984 = vmatpush1.bf16.msra.mxu0 %v960
        %985 = vmatprep.subr.bf16.mxu0 0
        %986 = vmatpush1.bf16.msra.mxu0 %v959
        %987 = vmatprep.subr.bf16.mxu0 0
        %988 = vmatpush2.bf16.msra.mxu0 0
        %989 = vmatprep.subr.bf16.mxu0 0
        %990 = vmatpush2.bf16.msra.mxu0 0
        %991 = vmatprep.subr.bf16.mxu0 0
        %992 = vmatpush2.bf16.msra.mxu0 0
        %993 = vmatprep.subr.bf16.mxu0 0
        %994 = vmatpush2.bf16.msra.mxu0 0
        %995 = vmatprep.subr.bf16.mxu0 0
        %996 = vmatpush2.bf16.msra.mxu0 0
        %997 = vmatprep.subr.bf16.mxu0 0
        %998 = vmatpush2.bf16.msra.mxu0 0
        %999 = vmatprep.subr.bf16.mxu0 0
        %1000 = vmatpush2.bf16.msra.mxu0 0
        %1001 = vmatprep.subr.bf16.mxu0 0
        %1002 = vmatpush2.bf16.msra.mxu0 0
        %1003 = vmatprep.mubr.bf16.mxu0 0
        %1004 = vmatmul.mubr.bf16.gmra.mxu0 %v969
        %v1005 = vpop.f32.mrf.mxu0
        %v1006 = vadd.f32 %v941, %v1005
        %v1007 = vpop.f32.mrf.mxu0
        %v1008 = vpop.f32.mrf.mxu0
        %v1009 = vpop.f32.mrf.mxu0
        %1010 = vdwg.mxu0
        %vm1011 = vcmp.gt.f32.partialorder %v1006, 0.0
        %v1012 = vmul.f32 %v1006, 0.01
        %v1013 = vsel %vm1011, %v1006, %v1012
        %1014 = vst.msk [vmem:[%s292] sm:$0xff] %vm391, %v1013
        %s1015 = sand.u32 %s181, 1
        %s1016 = scalar_lea.sflag [#allocation7], %s1015
        %s1017 = sand.u32 %s181, 1
        %s1018 = smul.addr %s1017, 8
        %s1019 = scalar_lea.vmem [#allocation8], %s1018
        // Predicated region
        $region53: #{tpu_custom_call.1} parent=43 // pred_check
          %p1020 = pneg %p191
        $region54: #{tpu_custom_call.1} parent=43 // pred_check_branch
          %1022 = sbr.rel (%p1020) target = $region56
        $region55: #{tpu_custom_call.1} parent=43 // pred_region
          %s1024 = ssub.s32 128, 128
          %1025 = vsyncadd %s1016, %s1024
          %s1026 = sadd.s32 %s26, %s25
          %s1027 = smul.addr %s1026, 128
          %s1028 = scalar_lea.hbm %s6, %s1027
          %s1030 = sshll.u32 %s1019, 4
          %s1031 = int_to_ptr.vmem [resolvable:$true] %s1030
          %1033 = dma.vmem_to_hbm [thread:$0]  %s1031, 128, %s1028, %s1016
        $region56: #{tpu_custom_call.1} parent=43 // pred_fallthru
          _
      $region44: #{tpu_custom_call.1} parent=5 // pred_fallthru
        _
      %p1034 = scmp.le.s32.totalorder 2, %s16
      // Predicated region
      $region57: #{tpu_custom_call.1} parent=5 // pred_check
        %p1035 = pneg %p1034
      $region58: #{tpu_custom_call.1} parent=5 // pred_check_branch
        %1037 = sbr.rel (%p1035) target = $region60
      $region59: #{tpu_custom_call.1} parent=5 // pred_region
        %s1038 = ssub.s32 %s16, 2
        // Predicated region
        $region61: #{tpu_custom_call.1} parent=59 // pred_check
          %p1039 = pneg %p197
        $region62: #{tpu_custom_call.1} parent=59 // pred_check_branch
          %1041 = sbr.rel (%p1039) target = $region64
        $region63: #{tpu_custom_call.1} parent=59 // pred_region
          %s1042 = sand.u32 %s182, 1
          %s1043 = scalar_lea.sflag [#allocation7], %s1042
          %s1044 = sand.u32 %s182, 1
          %s1045 = smul.addr %s1044, 8
          %s1046 = scalar_lea.vmem [#allocation8], %s1045
          %1047 = dma.done %s1043, 128
        $region64: #{tpu_custom_call.1} parent=59 // pred_fallthru
          _
      $region60: #{tpu_custom_call.1} parent=5 // pred_fallthru
        _
    $region6: #{tpu_custom_call.1} parent=1 // loop_footer
      %s20 = sadd.s32 1, %s16
    $region7: #{tpu_custom_call.1} parent=1 // loop_footer_branch
      %15 = sbr.rel target = $region3
    $region8: #{tpu_custom_call.1} parent=1 // loop_exit
      _
    %1048 = vsyncpa [#allocation6], 1
    %s1049 = scalar_lea.sflag [#allocation6], 1
    %1050 = vsyncpa %s1049, 1
    %1051 = vsyncpa [#allocation7], 1
    %s1052 = scalar_lea.sflag [#allocation7], 1
    %1053 = vsyncpa %s1052, 1

</llo_original>
